<compile_context>
chip_gen: v5e
topology: v5e:2x2
jax: 0.10.0
libtpu: 0.0.40
codegen_flags: <defaults>
</compile_context>

<pallas_src>
import functools

import jax
import jax.numpy as jnp
from jax.experimental import pallas as pl
from jax.experimental.pallas import tpu as pltpu


_ELTWISE = {
    "relu": lambda x: jnp.maximum(x, 0.0),
    "sigmoid": jax.nn.sigmoid,
    "tanh": jnp.tanh,
}


# ---------------------------------------------------------------------------
# helpers
# ---------------------------------------------------------------------------
def _pick_tile(dim, pref, align):
    """Largest tile <= pref that is a multiple of `align` and divides `dim`;
    falls back to the full dimension (always a legal block shape)."""
    if dim <= pref:
        return dim
    t = (pref // align) * align
    while t >= align:
        if dim % t == 0:
            return t
        t -= align
    # TODO(synk): ragged tiles via cdiv grid + in-kernel masking; the full-dim
    # fallback stays correct but disables K pipelining for awkward dims.
    return dim


def _default_use_int8_mxu():
    """int8 MXU exists on v5e/v6e; v7x dropped integer MXU (fp8 only)."""
    try:
        kind = jax.devices()[0].device_kind.lower()
    except Exception:
        return False
    return ("v5" in kind) or ("v6" in kind)


def _vmem_limit_bytes():
    """Generation-aware scoped-VMEM limit (v7x only has 64 MiB physical)."""
    cap = None
    try:
        info_fn = getattr(pltpu, "get_tpu_info", None)
        cap = getattr(info_fn(), "vmem_capacity_bytes", None) if info_fn else None
    except Exception:
        cap = None
    if not cap:
        cap = 64 * 1024 * 1024
    return int(min(cap * 3 // 4, 100 * 1024 * 1024))


# ---------------------------------------------------------------------------
# Pre-pass: dynamic per-tensor uint8 quantization of activations, ONCE over
# [M, K] (not once per (j, k) matmul step).  Outputs:
#   x_s  [M, K]  = clip(round(x/s) + zp, 0, 255) - 128   (int8 or bf16)
#   rsum [M, 1]  = sum_k (x_q - zp)                       (f32)
# The -128 shift keeps x_s inside signed int8 for ANY zero point; it is folded
# back out in the matmul epilogue using precomputed weight column sums.
# ---------------------------------------------------------------------------
def _quantize_act_kernel(inv_ref, zp_ref, x_ref, xs_ref, rsum_ref):
    k = pl.program_id(1)
    inv = inv_ref[0]
    zp = zp_ref[0]
    x = x_ref[...].astype(jnp.float32)
    # NOTE: jnp.round is round-half-to-even; oneDNN/zentorch quantization uses
    # round-half-away-from-zero, so results can differ by one step at exact .5.
    x_q = jnp.clip(jnp.round(x * inv) + zp, 0.0, 255.0)
    xs_ref[...] = (x_q - 128.0).astype(xs_ref.dtype)

    @pl.when(k == 0)
    def _():
        rsum_ref[...] = jnp.zeros_like(rsum_ref)

    rsum_ref[...] += jnp.sum(x_q - zp, axis=1, keepdims=True)


def _quantize_activations(inp, inp_scale, inp_zero_point, act_dtype):
    M, K = inp.shape
    tm = _pick_tile(M, 512, 8)
    tk = _pick_tile(K, 512, 128)
    inv = (1.0 / jnp.asarray(inp_scale, jnp.float32)).reshape(1)
    zp = jnp.asarray(inp_zero_point, jnp.float32).reshape(1)
    return pl.pallas_call(
        _quantize_act_kernel,
        out_shape=(jax.ShapeDtypeStruct((M, K), act_dtype),
                   jax.ShapeDtypeStruct((M, 1), jnp.float32)),
        grid_spec=pltpu.PrefetchScalarGridSpec(
            num_scalar_prefetch=2,
            grid=(M // tm, K // tk),
            in_specs=[pl.BlockSpec((tm, tk), lambda i, k, *_: (i, k))],
            out_specs=[pl.BlockSpec((tm, tk), lambda i, k, *_: (i, k)),
                       pl.BlockSpec((tm, 1), lambda i, k, *_: (i, 0))],
        ),
        compiler_params=pltpu.CompilerParams(
            dimension_semantics=("parallel", "arbitrary")),
    )(inv, zp, inp)


# ---------------------------------------------------------------------------
# Main matmul kernel: pure MXU accumulation over K, epilogue on the last K step.
# ---------------------------------------------------------------------------
def _qlinear_matmul_kernel(scale_ref, shift_ref,                       # SMEM scalars
                           x_ref, w_ref, rsum_ref, b_ref, ws_ref,      # VMEM inputs
                           wzp_ref, wcol_ref,
                           o_ref,                                      # VMEM output
                           acc_ref,                                    # VMEM scratch
                           *, eltwise, int8_mxu):
    k = pl.program_id(2)

    @pl.when(k == 0)
    def _():
        acc_ref[...] = jnp.zeros_like(acc_ref)

    if int8_mxu:
        # v5e / v6e integer MXU: ~2x bf16 throughput, exact int32 accumulation,
        # no per-step operand upcast.
        acc_ref[...] += jnp.dot(x_ref[...], w_ref[...],
                                preferred_element_type=jnp.int32)
    else:
        # v7x (no integer MXU) / generic path: operands are small integers
        # (|x_s| <= 128, |w| <= 127) that bf16 represents exactly.
        x = x_ref[...]
        if x.dtype != jnp.bfloat16:
            x = x.astype(jnp.bfloat16)
        w = w_ref[...]
        if w.dtype != jnp.bfloat16:
            w = w.astype(jnp.bfloat16)
        acc_ref[...] += jnp.dot(x, w, preferred_element_type=jnp.float32)

    @pl.when(k == pl.num_programs(2) - 1)
    def _():
        scale = scale_ref[0]                 # per-tensor activation scale
        shift = shift_ref[0]                 # 128 - zp  (f32)
        acc = acc_ref[...].astype(jnp.float32)
        # (x_q - zp) @ (w - wzp)^T
        #   = x_s @ w^T + shift * colsum(w) - rowsum(x_q - zp) * wzp
        acc = acc + shift * wcol_ref[...] - rsum_ref[...] * wzp_ref[...]
        out = acc * (scale * ws_ref[...]) + b_ref[...]
        o_ref[...] = _ELTWISE[eltwise](out).astype(o_ref.dtype)


# ---------------------------------------------------------------------------
# One-time (model-load) weight prep.
# ---------------------------------------------------------------------------
def prepare_qlinear_weight(weight, *, weight_dtype=jnp.int8):
    """weight: [N, K] int8.  Returns (weight_t, weight_colsum):
      weight_t      [K, N] in `weight_dtype` (int8 keeps HBM traffic at 1 B/elem;
                    pass jnp.bfloat16 on v7x compute-bound shapes to drop the
                    per-step int8->bf16 cast).
      weight_colsum [N] f32 = sum_k weight[n, k] (folds out the -128 activation
                    shift in the epilogue)."""
    w = jnp.asarray(weight, dtype=jnp.int8)
    wcol = jnp.sum(w.astype(jnp.float32), axis=1)
    return jnp.transpose(w).astype(weight_dtype), wcol


# ---------------------------------------------------------------------------
# Wrapper
# ---------------------------------------------------------------------------
def qlinear_eltwise(inp, weight_t, weight_colsum, bias, inp_scale, inp_zero_point,
                    weight_scales, weight_zero_points, *, eltwise="relu",
                    mxu="auto", tm=256, tn=512, tk=1024):
    """inp: [M, K] float; weight_t/[K,N] + weight_colsum from prepare_qlinear_weight;
    bias / weight_scales / weight_zero_points: per-channel [N]; inp_scale /
    inp_zero_point: per-tensor scalars.  Returns eltwise(qlinear(...)), dtype == inp.dtype."""
    if eltwise not in _ELTWISE:
        raise ValueError(f"unsupported eltwise op: {eltwise}")
    M, K = inp.shape
    Kw, N = weight_t.shape
    assert Kw == K, "weight_t must be the [K, N] pre-transposed weight"

    # ---- tile selection -------------------------------------------------
    tm = _pick_tile(M, tm, 8)
    tk = _pick_tile(K, tk, 128)
    tn = _pick_tile(N, tn, 128)
    # Keep >= 2 blocks along N when M gives a single block so the "parallel"
    # j axis can still shard across the 2 TensorCores of a v7x megacore.
    if M // tm == 1 and N // tn < 2:
        half = _pick_tile(N, max(128, tn // 2), 128)
        if N // half >= 2:
            tn = half
    grid = (M // tm, N // tn, K // tk)

    # ---- MXU path selection ----------------------------------------------
    if mxu == "auto":
        int8_path = _default_use_int8_mxu()
    elif mxu == "int8":
        int8_path = True
    elif mxu == "bf16":
        int8_path = False
    else:
        raise ValueError(f"mxu must be 'auto'|'int8'|'bf16', got {mxu!r}")
    int8_path = bool(int8_path and weight_t.dtype == jnp.int8)

    # Small-batch inference is weight-bandwidth bound: deeper weight buffering.
    deep_w_buffer = M <= 64

    scale = jnp.asarray(inp_scale, jnp.float32).reshape(1)
    shift = (jnp.float32(128.0) - jnp.asarray(inp_zero_point, jnp.float32)).reshape(1)
    bias2 = jnp.asarray(bias, jnp.float32).reshape(1, N)
    ws2 = jnp.broadcast_to(jnp.asarray(weight_scales, jnp.float32).reshape(1, -1), (1, N))
    wzp2 = jnp.broadcast_to(jnp.asarray(weight_zero_points, jnp.float32).reshape(1, -1), (1, N))
    wcol2 = jnp.asarray(weight_colsum, jnp.float32).reshape(1, N)

    def _run(use_int8, deep_buffer):
        act_dtype = jnp.int8 if use_int8 else jnp.bfloat16
        acc_dtype = jnp.int32 if use_int8 else jnp.float32
        x_s, rsum = _quantize_activations(inp, inp_scale, inp_zero_point, act_dtype)

        w_idx = lambda i, j, k, *_: (k, j)
        w_spec = pl.BlockSpec((tk, tn), w_idx)
        if deep_buffer and getattr(pl, "Buffered", None) is not None:
            try:
                w_spec = pl.BlockSpec((tk, tn), w_idx, pipeline_mode=pl.Buffered(3))
            except TypeError:
                pass  # pipeline_mode unsupported in this JAX build

        kernel = functools.partial(_qlinear_matmul_kernel,
                                   eltwise=eltwise, int8_mxu=use_int8)
        return pl.pallas_call(
            kernel,
            out_shape=jax.ShapeDtypeStruct((M, N), inp.dtype),
            grid_spec=pltpu.PrefetchScalarGridSpec(
                num_scalar_prefetch=2,
                grid=grid,
                in_specs=[
                    pl.BlockSpec((tm, tk), lambda i, j, k, *_: (i, k)),  # x_s
                    w_spec,                                              # weight [K,N]
                    pl.BlockSpec((tm, 1), lambda i, j, k, *_: (i, 0)),   # rowsum(x_c)
                    pl.BlockSpec((1, tn), lambda i, j, k, *_: (0, j)),   # bias
                    pl.BlockSpec((1, tn), lambda i, j, k, *_: (0, j)),   # weight scales
                    pl.BlockSpec((1, tn), lambda i, j, k, *_: (0, j)),   # weight zps
                    pl.BlockSpec((1, tn), lambda i, j, k, *_: (0, j)),   # weight colsums
                ],
                out_specs=pl.BlockSpec((tm, tn), lambda i, j, k, *_: (i, j)),
                scratch_shapes=[pltpu.VMEM((tm, tn), acc_dtype)],
            ),
            compiler_params=pltpu.CompilerParams(
                dimension_semantics=("parallel", "parallel", "arbitrary"),
                vmem_limit_bytes=_vmem_limit_bytes(),
            ),
        )(scale, shift, x_s, weight_t, rsum, bias2, ws2, wzp2, wcol2)

    attempts = [(int8_path, deep_w_buffer)]
    if int8_path or deep_w_buffer:
        attempts.append((False, False))   # robust fallback path
    last_err = None
    for use_int8, deep in attempts:
        try:
            return _run(use_int8, deep)
        except Exception as err:          # fall back to the generic bf16 path
            last_err = err
    raise last_err


def custom_model_qlinear_eltwise(inp, weight, bias, inp_scales, inp_zero_points,
                                 weight_scales, weight_zero_points, *,
                                 eltwise_op="relu"):
    """Drop-in equivalent of the PyTorch module forward (weight is [N, K] int8).
    For repeated inference, hoist prepare_qlinear_weight and call qlinear_eltwise."""
    weight_t, wcol = prepare_qlinear_weight(weight)
    return qlinear_eltwise(inp, weight_t, wcol, bias, inp_scales, inp_zero_points,
                           weight_scales, weight_zero_points, eltwise=eltwise_op)


# ---------------------------------------------------------------------------
# Reference + self-test
# ---------------------------------------------------------------------------
def _reference(inp, weight, bias, inp_scale, inp_zp, w_scales, w_zps, eltwise):
    inv = 1.0 / inp_scale.astype(jnp.float32)
    zp = inp_zp.astype(jnp.float32)
    x_q = jnp.clip(jnp.round(inp.astype(jnp.float32) * inv) + zp, 0.0, 255.0)
    x_c = x_q - zp
    w_c = weight.astype(jnp.float32) - w_zps.astype(jnp.float32)[:, None]
    acc = jnp.dot(x_c, w_c.T, precision=jax.lax.Precision.HIGHEST,
                  preferred_element_type=jnp.float32)
    out = acc * (inp_scale * w_scales)[None, :] + bias[None, :]
    return _ELTWISE[eltwise](out).astype(inp.dtype)


if __name__ == "__main__":
    # Small qlinear-like shapes: batch M=8, in_features K=256, out_features N=256.
    M, K, N = 8, 256, 256

    key = jax.random.PRNGKey(0)
    k_inp, k_w, k_b, k_ws, k_wzp = jax.random.split(key, 5)

    inp = jax.random.normal(k_inp, (M, K), dtype=jnp.float32) * 2.0
    weight = jax.random.randint(k_w, (N, K), -128, 128, dtype=jnp.int32).astype(jnp.int8)
    bias = jax.random.normal(k_b, (N,), dtype=jnp.float32)

    inp_scale = jnp.asarray(0.05, dtype=jnp.float32)
    inp_zero_point = jnp.asarray(100, dtype=jnp.int32)     # asymmetric uint8 zp
    weight_scales = jax.random.uniform(k_ws, (N,), jnp.float32, 0.01, 0.03)
    weight_zero_points = jax.random.randint(k_wzp, (N,), -5, 6, dtype=jnp.int32)

    # One-time weight prep (model-load time for inference).
    weight_t, wcol = prepare_qlinear_weight(weight)
    weight_t = jax.block_until_ready(weight_t)
    wcol = jax.block_until_ready(wcol)

    def check(out, ref):
        assert out.shape == ref.shape and out.dtype == ref.dtype
        assert jnp.allclose(out, ref, atol=1e-2, rtol=1e-3), "mismatch vs reference"

    # relu: default tiles (auto MXU path), small tiles (K/N tiling), forced bf16 path.
    ref_relu = _reference(inp, weight, bias, inp_scale, inp_zero_point,
                          weight_scales, weight_zero_points, "relu")
    out_a = jax.block_until_ready(
        qlinear_eltwise(inp, weight_t, wcol, bias, inp_scale, inp_zero_point,
                        weight_scales, weight_zero_points, eltwise="relu"))
    out_b = jax.block_until_ready(
        qlinear_eltwise(inp, weight_t, wcol, bias, inp_scale, inp_zero_point,
                        weight_scales, weight_zero_points, eltwise="relu",
                        tm=8, tn=128, tk=128))
    out_c = jax.block_until_ready(
        qlinear_eltwise(inp, weight_t, wcol, bias, inp_scale, inp_zero_point,
                        weight_scales, weight_zero_points, eltwise="relu",
                        mxu="bf16"))
    for out in (out_a, out_b, out_c):
        check(out, ref_relu)

    # sigmoid via the module-style convenience wrapper (matches torch forward args).
    ref_sig = _reference(inp, weight, bias, inp_scale, inp_zero_point,
                         weight_scales, weight_zero_points, "sigmoid")
    out_d = jax.block_until_ready(
        custom_model_qlinear_eltwise(inp, weight, bias, inp_scale, inp_zero_point,
                                     weight_scales, weight_zero_points,
                                     eltwise_op="sigmoid"))
    check(out_d, ref_sig)

    print("KERNEL_OK")
</pallas_src>

<mosaic_0001>
module attributes {stable_mosaic.version = 11 : i64} {
  func.func @_quantize_act_kernel(%arg0: i32, %arg1: i32, %arg2: memref<1xf32, #tpu.memory_space<smem>>, %arg3: memref<1xf32, #tpu.memory_space<smem>>, %arg4: memref<8x256xf32, #tpu.memory_space<vmem>>, %arg5: memref<8x256xbf16, #tpu.memory_space<vmem>>, %arg6: memref<8x1xf32, #tpu.memory_space<vmem>>) attributes {dimension_semantics = [#tpu.dimension_semantics<parallel>, #tpu.dimension_semantics<arbitrary>], iteration_bounds = array<i64: 1, 1>, scalar_prefetch = 2 : i64, scratch_operands = 0 : i64, tpu.core_type = #tpu.core_type<tc>, window_params = [{transform_indices = @transform_0, window_bounds = array<i64: 8, 256>}, {transform_indices = @transform_1, window_bounds = array<i64: 8, 256>}, {transform_indices = @transform_2, window_bounds = array<i64: 8, 1>}]} {
    %c0 = arith.constant 0 : index
    %0 = memref.load %arg2[%c0] : memref<1xf32, #tpu.memory_space<smem>>
    %c0_0 = arith.constant 0 : index
    %1 = memref.load %arg3[%c0_0] : memref<1xf32, #tpu.memory_space<smem>>
    %c0_1 = arith.constant 0 : index
    %c0_2 = arith.constant 0 : index
    %2 = vector.load %arg4[%c0_1, %c0_2] : memref<8x256xf32, #tpu.memory_space<vmem>>, vector<8x256xf32>
    %3 = vector.broadcast %0 : f32 to vector<8x256xf32>
    %4 = arith.mulf %2, %3 : vector<8x256xf32>
    %5 = math.roundeven %4 : vector<8x256xf32>
    %6 = vector.broadcast %1 : f32 to vector<8x256xf32>
    %7 = arith.addf %5, %6 : vector<8x256xf32>
    %cst = arith.constant 0.000000e+00 : f32
    %cst_3 = arith.constant 2.550000e+02 : f32
    %8 = vector.broadcast %cst : f32 to vector<8x256xf32>
    %9 = arith.maximumf %8, %7 : vector<8x256xf32>
    %10 = vector.broadcast %cst_3 : f32 to vector<8x256xf32>
    %11 = arith.minimumf %10, %9 : vector<8x256xf32>
    %cst_4 = arith.constant 1.280000e+02 : f32
    %12 = vector.broadcast %cst_4 : f32 to vector<8x256xf32>
    %13 = arith.subf %11, %12 : vector<8x256xf32>
    %14 = arith.truncf %13 : vector<8x256xf32> to vector<8x256xbf16>
    %c0_5 = arith.constant 0 : index
    %c0_6 = arith.constant 0 : index
    %15 = vector.load %arg5[%c0_5, %c0_6] : memref<8x256xbf16, #tpu.memory_space<vmem>>, vector<8x256xbf16>
    tpu.vector_store %arg5[%c0_5, %c0_6], %14 {strides = array<i32>} : memref<8x256xbf16, #tpu.memory_space<vmem>>, vector<8x256xbf16>,
    %c0_i32 = arith.constant 0 : i32
    %16 = arith.cmpi eq, %arg1, %c0_i32 : i32
    %17 = arith.extui %16 : i1 to i32
    %c0_i32_7 = arith.constant 0 : i32
    %18 = arith.cmpi ne, %17, %c0_i32_7 : i32
    scf.if %18 {
      %cst_13 = arith.constant 0.000000e+00 : f32
      %26 = vector.broadcast %cst_13 : f32 to vector<8x1xf32>
      %c0_14 = arith.constant 0 : index
      %c0_15 = arith.constant 0 : index
      %27 = vector.load %arg6[%c0_14, %c0_15] : memref<8x1xf32, #tpu.memory_space<vmem>>, vector<8x1xf32>
      tpu.vector_store %arg6[%c0_14, %c0_15], %26 {strides = array<i32>} : memref<8x1xf32, #tpu.memory_space<vmem>>, vector<8x1xf32>,
    } else {
    }
    %c0_8 = arith.constant 0 : index
    %c0_9 = arith.constant 0 : index
    %19 = vector.load %arg6[%c0_8, %c0_9] : memref<8x1xf32, #tpu.memory_space<vmem>>, vector<8x1xf32>
    %20 = vector.broadcast %1 : f32 to vector<8x256xf32>
    %21 = arith.subf %11, %20 : vector<8x256xf32>
    %cst_10 = arith.constant dense<0.000000e+00> : vector<8xf32>
    %22 = vector.multi_reduction <add>, %21, %cst_10 [1] : vector<8x256xf32> to vector<8xf32>
    %23 = vector.shape_cast %22 : vector<8xf32> to vector<8x1xf32>
    %24 = arith.addf %19, %23 : vector<8x1xf32>
    %c0_11 = arith.constant 0 : index
    %c0_12 = arith.constant 0 : index
    %25 = vector.load %arg6[%c0_11, %c0_12] : memref<8x1xf32, #tpu.memory_space<vmem>>, vector<8x1xf32>
    tpu.vector_store %arg6[%c0_11, %c0_12], %24 {strides = array<i32>} : memref<8x1xf32, #tpu.memory_space<vmem>>, vector<8x1xf32>,
    return
  }
  func.func @transform_0(%arg0: i32, %arg1: i32, %arg2: memref<1xf32, #tpu.memory_space<smem>>, %arg3: memref<1xf32, #tpu.memory_space<smem>>) -> (i32, i32) {
    %c0_i32 = arith.constant 0 : i32
    return %arg0, %arg1 : i32, i32
  }
  func.func @transform_1(%arg0: i32, %arg1: i32, %arg2: memref<1xf32, #tpu.memory_space<smem>>, %arg3: memref<1xf32, #tpu.memory_space<smem>>) -> (i32, i32) {
    %c0_i32 = arith.constant 0 : i32
    return %arg0, %arg1 : i32, i32
  }
  func.func @transform_2(%arg0: i32, %arg1: i32, %arg2: memref<1xf32, #tpu.memory_space<smem>>, %arg3: memref<1xf32, #tpu.memory_space<smem>>) -> (i32, i32) {
    %c0_i32 = arith.constant 0 : i32
    %c0_i32_0 = arith.constant 0 : i32
    return %arg0, %c0_i32 : i32, i32
  }
}

module attributes {stable_mosaic.version = 11 : i64} {
  func.func @_quantize_act_kernel(%arg0: i32, %arg1: i32, %arg2: memref<1xf32, #tpu.memory_space<smem>>, %arg3: memref<1xf32, #tpu.memory_space<smem>>, %arg4: memref<8x256xf32, #tpu.memory_space<vmem>>, %arg5: memref<8x256xbf16, #tpu.memory_space<vmem>>, %arg6: memref<8x1xf32, #tpu.memory_space<vmem>>) attributes {dimension_semantics = [#tpu.dimension_semantics<parallel>, #tpu.dimension_semantics<arbitrary>], iteration_bounds = array<i64: 1, 1>, scalar_prefetch = 2 : i64, scratch_operands = 0 : i64, tpu.core_type = #tpu.core_type<tc>, window_params = [{transform_indices = @transform_0, window_bounds = array<i64: 8, 256>}, {transform_indices = @transform_1, window_bounds = array<i64: 8, 256>}, {transform_indices = @transform_2, window_bounds = array<i64: 8, 1>}]} {
    %c0 = arith.constant 0 : index
    %0 = memref.load %arg2[%c0] : memref<1xf32, #tpu.memory_space<smem>>
    %c0_0 = arith.constant 0 : index
    %1 = memref.load %arg3[%c0_0] : memref<1xf32, #tpu.memory_space<smem>>
    %c0_1 = arith.constant 0 : index
    %c0_2 = arith.constant 0 : index
    %2 = vector.load %arg4[%c0_1, %c0_2] : memref<8x256xf32, #tpu.memory_space<vmem>>, vector<8x256xf32>
    %3 = vector.broadcast %0 : f32 to vector<8x256xf32>
    %4 = arith.mulf %2, %3 : vector<8x256xf32>
    %5 = math.roundeven %4 : vector<8x256xf32>
    %6 = vector.broadcast %1 : f32 to vector<8x256xf32>
    %7 = arith.addf %5, %6 : vector<8x256xf32>
    %cst = arith.constant 0.000000e+00 : f32
    %cst_3 = arith.constant 2.550000e+02 : f32
    %8 = vector.broadcast %cst : f32 to vector<8x256xf32>
    %9 = arith.maximumf %8, %7 : vector<8x256xf32>
    %10 = vector.broadcast %cst_3 : f32 to vector<8x256xf32>
    %11 = arith.minimumf %10, %9 : vector<8x256xf32>
    %cst_4 = arith.constant 1.280000e+02 : f32
    %12 = vector.broadcast %cst_4 : f32 to vector<8x256xf32>
    %13 = arith.subf %11, %12 : vector<8x256xf32>
    %14 = arith.truncf %13 : vector<8x256xf32> to vector<8x256xbf16>
    %c0_5 = arith.constant 0 : index
    %c0_6 = arith.constant 0 : index
    %15 = vector.load %arg5[%c0_5, %c0_6] : memref<8x256xbf16, #tpu.memory_space<vmem>>, vector<8x256xbf16>
    tpu.vector_store %arg5[%c0_5, %c0_6], %14 {strides = array<i32>} : memref<8x256xbf16, #tpu.memory_space<vmem>>, vector<8x256xbf16>,
    %c0_i32 = arith.constant 0 : i32
    %16 = arith.cmpi eq, %arg1, %c0_i32 : i32
    %17 = arith.extui %16 : i1 to i32
    %c0_i32_7 = arith.constant 0 : i32
    %18 = arith.cmpi ne, %17, %c0_i32_7 : i32
    scf.if %18 {
      %cst_13 = arith.constant 0.000000e+00 : f32
      %26 = vector.broadcast %cst_13 : f32 to vector<8x1xf32>
      %c0_14 = arith.constant 0 : index
      %c0_15 = arith.constant 0 : index
      %27 = vector.load %arg6[%c0_14, %c0_15] : memref<8x1xf32, #tpu.memory_space<vmem>>, vector<8x1xf32>
      tpu.vector_store %arg6[%c0_14, %c0_15], %26 {strides = array<i32>} : memref<8x1xf32, #tpu.memory_space<vmem>>, vector<8x1xf32>,
    } else {
    }
    %c0_8 = arith.constant 0 : index
    %c0_9 = arith.constant 0 : index
    %19 = vector.load %arg6[%c0_8, %c0_9] : memref<8x1xf32, #tpu.memory_space<vmem>>, vector<8x1xf32>
    %20 = vector.broadcast %1 : f32 to vector<8x256xf32>
    %21 = arith.subf %11, %20 : vector<8x256xf32>
    %cst_10 = arith.constant dense<0.000000e+00> : vector<8xf32>
    %22 = vector.multi_reduction <add>, %21, %cst_10 [1] : vector<8x256xf32> to vector<8xf32>
    %23 = vector.shape_cast %22 : vector<8xf32> to vector<8x1xf32>
    %24 = arith.addf %19, %23 : vector<8x1xf32>
    %c0_11 = arith.constant 0 : index
    %c0_12 = arith.constant 0 : index
    %25 = vector.load %arg6[%c0_11, %c0_12] : memref<8x1xf32, #tpu.memory_space<vmem>>, vector<8x1xf32>
    tpu.vector_store %arg6[%c0_11, %c0_12], %24 {strides = array<i32>} : memref<8x1xf32, #tpu.memory_space<vmem>>, vector<8x1xf32>,
    return
  }
  func.func @transform_0(%arg0: i32, %arg1: i32, %arg2: memref<1xf32, #tpu.memory_space<smem>>, %arg3: memref<1xf32, #tpu.memory_space<smem>>) -> (i32, i32) {
    %c0_i32 = arith.constant 0 : i32
    return %arg0, %arg1 : i32, i32
  }
  func.func @transform_1(%arg0: i32, %arg1: i32, %arg2: memref<1xf32, #tpu.memory_space<smem>>, %arg3: memref<1xf32, #tpu.memory_space<smem>>) -> (i32, i32) {
    %c0_i32 = arith.constant 0 : i32
    return %arg0, %arg1 : i32, i32
  }
  func.func @transform_2(%arg0: i32, %arg1: i32, %arg2: memref<1xf32, #tpu.memory_space<smem>>, %arg3: memref<1xf32, #tpu.memory_space<smem>>) -> (i32, i32) {
    %c0_i32 = arith.constant 0 : i32
    %c0_i32_0 = arith.constant 0 : i32
    return %arg0, %c0_i32 : i32, i32
  }
}

</mosaic_0001>

<llo_original>
// kernel: tpu_custom_call.1
$region0: #{tpu_custom_call.1}
  #allocation0 [shape = 'u32[]', space=smem, size = 0x4, offset = 0x4, fixed_abs, tag = 'smem constant byte address 0x4 - core index']
  #allocation1 [shape = 'u32[72,128]{1,0:T(1,128)}', space=vmem, size = 0x9000, scoped, tag = 'internal scratch']
  #allocation2 [shape = 's32[1]{0}', space=sflag, size = 0x4, scoped, tag = 'scoped memory for tpu_custom_call.1']
  #allocation3 [shape = 'f32[1]{0:T(128)S(6)}', space=smem, size = 0x200, scoped, tag = 'prefetched SMEM operand 0']
  #allocation4 [shape = 'f32[1]{0:T(128)S(6)}', space=smem, size = 0x200, scoped, tag = 'prefetched SMEM operand 1']
  %s0 = inlined_call_operand.<no memory space> [shape: f32[1], index: 0, kind: input, shape index: {}]
  %s1 = inlined_call_operand.<no memory space> [shape: f32[1], index: 1, kind: input, shape index: {}]
  %s2 = inlined_call_operand.hbm [shape: f32[8,256], index: 2, kind: input, shape index: {}]
  %s3 = inlined_call_operand.hbm [shape: bf16[8,256], index: 3, kind: output, shape index: {0}]
  %s4 = inlined_call_operand.vmem [shape: f32[8,1], index: 4, kind: output, shape index: {1}]
  %5 = xla_tuple %s3, %s4
  %s6 = sld [smem:[#allocation0]]
  $region30: #{tpu_custom_call.1} parent=0
    _
  %s8 = ssub.s32 1, %s6
  %s9 = scalar_select 0, %s8, %s6
  %10 = sst [smem:[#allocation3]] %s0
  %11 = sst [smem:[#allocation4]] %s1
  $region1: #{tpu_custom_call.1} parent=0
    #allocation5 [shape = 'u8[8192]{0}', space=vmem, size = 0x2000, scoped, tag = 'input window, operand 2, single buffered']
    #allocation6 [shape = 's32[1]{0}', space=sflag, size = 0x4, scoped, tag = 'scoped memory for tpu_custom_call.1']
    #allocation7 [shape = 's32[1]{0}', space=sflag, size = 0x4, scoped, tag = 'scoped memory for tpu_custom_call.1']
    #allocation8 [shape = 'u8[4096]{0}', space=vmem, size = 0x1000, scoped, tag = 'output window, operand 0, single buffered']
    %12 = vsyncpa [#allocation6], 0
    %13 = vsyncpa [#allocation7], 0
    // Predicated region
    $region2: #{tpu_custom_call.1} parent=1 // pred_check
      _
    $region3: #{tpu_custom_call.1} parent=1 // pred_check_branch
      %15 = sbr.rel (0) target = $region5
    $region4: #{tpu_custom_call.1} parent=1 // pred_region
      %17 = vsyncadd [#allocation6], 0
      %s19 = sshll.u32 %s2, 4
      %s20 = int_to_ptr.hbm [resolvable:$true] %s19
      %s21 = sshll.u32 [#allocation5], 4
      %s22 = int_to_ptr.vmem [resolvable:$true] %s21
      %24 = dma.hbm_to_vmem [thread:$0]  %s20, 256, %s22, [#allocation6]
    $region5: #{tpu_custom_call.1} parent=1 // pred_fallthru
      _
    // Predicated region
    $region6: #{tpu_custom_call.1} parent=1 // pred_check
      _
    $region7: #{tpu_custom_call.1} parent=1 // pred_check_branch
      %26 = sbr.rel (0) target = $region9
    $region8: #{tpu_custom_call.1} parent=1 // pred_region
      %28 = dma.done [#allocation6], 256
    $region9: #{tpu_custom_call.1} parent=1 // pred_fallthru
      _
    %s29 = sld [smem:[#allocation3]]
    %s30 = sld [smem:[#allocation4]]
    %v31 = vld [vmem:[#allocation5] sm:$0xff]
    %v32 = vld [vmem:[#allocation5 + $0x8] sm:$0xff]
    %v33 = vstv %s29
    %v34 = vmul.f32 %v31, %v33
    %v35 = vmul.f32 %v32, %v33
    %v36 = vround.ne.pseudo %v34
    %v37 = vround.ne.pseudo %v35
    %v38 = vstv %s30
    %v39 = vadd.f32 %v36, %v38
    %v40 = vadd.f32 %v37, %v38
    %v41 = vmax.f32 %v39, 0.0
    %v42 = vmax.f32 %v40, 0.0
    %v43 = vmin.f32 %v41, 255.0
    %v44 = vmin.f32 %v42, 255.0
    %v45 = vsub.f32 %v43, 128.0
    %v46 = vsub.f32 %v44, 128.0
    %v47 = vpack.c.bf16 %v46, %v45
    %48 = vst [vmem:[#allocation8] sm:$0xff] %v47
    %p49 = scmp.eq.s32.totalorder 0, 0
    // Predicated region
    $region10: #{tpu_custom_call.1} parent=1 // pred_check
      %p50 = pneg %p49
    $region11: #{tpu_custom_call.1} parent=1 // pred_check_branch
      %52 = sbr.rel (%p50) target = $region13
    $region12: #{tpu_custom_call.1} parent=1 // pred_region
      %vm53 = vcmask 7168
      %54 = vst.msk [vmem:[%s4] sm:$0xff] %vm53, 0.0
    $region13: #{tpu_custom_call.1} parent=1 // pred_fallthru
      _
    %v55 = vld [vmem:[%s4] sm:$0xff]
    %v56 = vsub.f32 %v43, %v38
    %v57 = vsub.f32 %v44, %v38
    %v58 = vadd.f32 %v56, %v57
    %59 = vadd.xlane.f32.xlu0 %v58
    %v60 = vpop.xlane.xlu0 %59
    %v61 = vadd.f32 %v55, %v60
    %vm62 = vcmask 7168
    %63 = vst.msk [vmem:[%s4] sm:$0xff] %vm62, %v61
    // Predicated region
    $region14: #{tpu_custom_call.1} parent=1 // pred_check
      _
    $region15: #{tpu_custom_call.1} parent=1 // pred_check_branch
      %65 = sbr.rel (0) target = $region17
    $region16: #{tpu_custom_call.1} parent=1 // pred_region
      %67 = vsyncadd [#allocation7], 0
      %s69 = sshll.u32 [#allocation8], 4
      %s70 = int_to_ptr.vmem [resolvable:$true] %s69
      %s71 = sshll.u32 %s3, 4
      %s72 = int_to_ptr.hbm [resolvable:$true] %s71
      %74 = dma.vmem_to_hbm [thread:$0]  %s70, 128, %s72, [#allocation7]
    $region17: #{tpu_custom_call.1} parent=1 // pred_fallthru
      _
    // Predicated region
    $region18: #{tpu_custom_call.1} parent=1 // pred_check
      _
    $region19: #{tpu_custom_call.1} parent=1 // pred_check_branch
      %76 = sbr.rel (0) target = $region21
    $region20: #{tpu_custom_call.1} parent=1 // pred_region
      _
    $region21: #{tpu_custom_call.1} parent=1 // pred_fallthru
      _
    // Predicated region
    $region22: #{tpu_custom_call.1} parent=1 // pred_check
      _
    $region23: #{tpu_custom_call.1} parent=1 // pred_check_branch
      %78 = sbr.rel (0) target = $region25
    $region24: #{tpu_custom_call.1} parent=1 // pred_region
      %80 = dma.done [#allocation7], 128
    $region25: #{tpu_custom_call.1} parent=1 // pred_fallthru
      _
    // Predicated region
    $region26: #{tpu_custom_call.1} parent=1 // pred_check
      _
    $region27: #{tpu_custom_call.1} parent=1 // pred_check_branch
      %82 = sbr.rel (0) target = $region29
    $region28: #{tpu_custom_call.1} parent=1 // pred_region
      _
    $region29: #{tpu_custom_call.1} parent=1 // pred_fallthru
      _
    %83 = vsyncpa [#allocation6], 1
    %84 = vsyncpa [#allocation7], 1

// kernel: tpu_custom_call.1
$region0: #{tpu_custom_call.1}
  #allocation0 [shape = 'u32[]', space=smem, size = 0x4, offset = 0x4, fixed_abs, tag = 'smem constant byte address 0x4 - core index']
  #allocation1 [shape = 'u32[72,128]{1,0:T(1,128)}', space=vmem, size = 0x9000, scoped, tag = 'internal scratch']
  #allocation2 [shape = 's32[1]{0}', space=sflag, size = 0x4, scoped, tag = 'scoped memory for tpu_custom_call.1']
  #allocation3 [shape = 'f32[1]{0:T(128)S(6)}', space=smem, size = 0x200, scoped, tag = 'prefetched SMEM operand 0']
  #allocation4 [shape = 'f32[1]{0:T(128)S(6)}', space=smem, size = 0x200, scoped, tag = 'prefetched SMEM operand 1']
  %s0 = inlined_call_operand.<no memory space> [shape: f32[1], index: 0, kind: input, shape index: {}]
  %s1 = inlined_call_operand.<no memory space> [shape: f32[1], index: 1, kind: input, shape index: {}]
  %s2 = inlined_call_operand.hbm [shape: f32[8,256], index: 2, kind: input, shape index: {}]
  %s3 = inlined_call_operand.hbm [shape: bf16[8,256], index: 3, kind: output, shape index: {0}]
  %s4 = inlined_call_operand.vmem [shape: f32[8,1], index: 4, kind: output, shape index: {1}]
  %5 = xla_tuple %s3, %s4
  %s6 = sld [smem:[#allocation0]]
  $region30: #{tpu_custom_call.1} parent=0
    _
  %s8 = ssub.s32 1, %s6
  %s9 = scalar_select 0, %s8, %s6
  %10 = sst [smem:[#allocation3]] %s0
  %11 = sst [smem:[#allocation4]] %s1
  $region1: #{tpu_custom_call.1} parent=0
    #allocation5 [shape = 'u8[8192]{0}', space=vmem, size = 0x2000, scoped, tag = 'input window, operand 2, single buffered']
    #allocation6 [shape = 's32[1]{0}', space=sflag, size = 0x4, scoped, tag = 'scoped memory for tpu_custom_call.1']
    #allocation7 [shape = 's32[1]{0}', space=sflag, size = 0x4, scoped, tag = 'scoped memory for tpu_custom_call.1']
    #allocation8 [shape = 'u8[4096]{0}', space=vmem, size = 0x1000, scoped, tag = 'output window, operand 0, single buffered']
    %12 = vsyncpa [#allocation6], 0
    %13 = vsyncpa [#allocation7], 0
    // Predicated region
    $region2: #{tpu_custom_call.1} parent=1 // pred_check
      _
    $region3: #{tpu_custom_call.1} parent=1 // pred_check_branch
      %15 = sbr.rel (0) target = $region5
    $region4: #{tpu_custom_call.1} parent=1 // pred_region
      %17 = vsyncadd [#allocation6], 0
      %s19 = sshll.u32 %s2, 4
      %s20 = int_to_ptr.hbm [resolvable:$true] %s19
      %s21 = sshll.u32 [#allocation5], 4
      %s22 = int_to_ptr.vmem [resolvable:$true] %s21
      %24 = dma.hbm_to_vmem [thread:$0]  %s20, 256, %s22, [#allocation6]
    $region5: #{tpu_custom_call.1} parent=1 // pred_fallthru
      _
    // Predicated region
    $region6: #{tpu_custom_call.1} parent=1 // pred_check
      _
    $region7: #{tpu_custom_call.1} parent=1 // pred_check_branch
      %26 = sbr.rel (0) target = $region9
    $region8: #{tpu_custom_call.1} parent=1 // pred_region
      %28 = dma.done [#allocation6], 256
    $region9: #{tpu_custom_call.1} parent=1 // pred_fallthru
      _
    %s29 = sld [smem:[#allocation3]]
    %s30 = sld [smem:[#allocation4]]
    %v31 = vld [vmem:[#allocation5] sm:$0xff]
    %v32 = vld [vmem:[#allocation5 + $0x8] sm:$0xff]
    %v33 = vstv %s29
    %v34 = vmul.f32 %v31, %v33
    %v35 = vmul.f32 %v32, %v33
    %v36 = vround.ne.pseudo %v34
    %v37 = vround.ne.pseudo %v35
    %v38 = vstv %s30
    %v39 = vadd.f32 %v36, %v38
    %v40 = vadd.f32 %v37, %v38
    %v41 = vmax.f32 %v39, 0.0
    %v42 = vmax.f32 %v40, 0.0
    %v43 = vmin.f32 %v41, 255.0
    %v44 = vmin.f32 %v42, 255.0
    %v45 = vsub.f32 %v43, 128.0
    %v46 = vsub.f32 %v44, 128.0
    %v47 = vpack.c.bf16 %v46, %v45
    %48 = vst [vmem:[#allocation8] sm:$0xff] %v47
    %p49 = scmp.eq.s32.totalorder 0, 0
    // Predicated region
    $region10: #{tpu_custom_call.1} parent=1 // pred_check
      %p50 = pneg %p49
    $region11: #{tpu_custom_call.1} parent=1 // pred_check_branch
      %52 = sbr.rel (%p50) target = $region13
    $region12: #{tpu_custom_call.1} parent=1 // pred_region
      %vm53 = vcmask 7168
      %54 = vst.msk [vmem:[%s4] sm:$0xff] %vm53, 0.0
    $region13: #{tpu_custom_call.1} parent=1 // pred_fallthru
      _
    %v55 = vld [vmem:[%s4] sm:$0xff]
    %v56 = vsub.f32 %v43, %v38
    %v57 = vsub.f32 %v44, %v38
    %v58 = vadd.f32 %v56, %v57
    %59 = vadd.xlane.f32.xlu0 %v58
    %v60 = vpop.xlane.xlu0 %59
    %v61 = vadd.f32 %v55, %v60
    %vm62 = vcmask 7168
    %63 = vst.msk [vmem:[%s4] sm:$0xff] %vm62, %v61
    // Predicated region
    $region14: #{tpu_custom_call.1} parent=1 // pred_check
      _
    $region15: #{tpu_custom_call.1} parent=1 // pred_check_branch
      %65 = sbr.rel (0) target = $region17
    $region16: #{tpu_custom_call.1} parent=1 // pred_region
      %67 = vsyncadd [#allocation7], 0
      %s69 = sshll.u32 [#allocation8], 4
      %s70 = int_to_ptr.vmem [resolvable:$true] %s69
      %s71 = sshll.u32 %s3, 4
      %s72 = int_to_ptr.hbm [resolvable:$true] %s71
      %74 = dma.vmem_to_hbm [thread:$0]  %s70, 128, %s72, [#allocation7]
    $region17: #{tpu_custom_call.1} parent=1 // pred_fallthru
      _
    // Predicated region
    $region18: #{tpu_custom_call.1} parent=1 // pred_check
      _
    $region19: #{tpu_custom_call.1} parent=1 // pred_check_branch
      %76 = sbr.rel (0) target = $region21
    $region20: #{tpu_custom_call.1} parent=1 // pred_region
      _
    $region21: #{tpu_custom_call.1} parent=1 // pred_fallthru
      _
    // Predicated region
    $region22: #{tpu_custom_call.1} parent=1 // pred_check
      _
    $region23: #{tpu_custom_call.1} parent=1 // pred_check_branch
      %78 = sbr.rel (0) target = $region25
    $region24: #{tpu_custom_call.1} parent=1 // pred_region
      %80 = dma.done [#allocation7], 128
    $region25: #{tpu_custom_call.1} parent=1 // pred_fallthru
      _
    // Predicated region
    $region26: #{tpu_custom_call.1} parent=1 // pred_check
      _
    $region27: #{tpu_custom_call.1} parent=1 // pred_check_branch
      %82 = sbr.rel (0) target = $region29
    $region28: #{tpu_custom_call.1} parent=1 // pred_region
      _
    $region29: #{tpu_custom_call.1} parent=1 // pred_fallthru
      _
    %83 = vsyncpa [#allocation6], 1
    %84 = vsyncpa [#allocation7], 1

</llo_original>
